<compile_context>
chip_gen: v6e
topology: v6e:2x2x1
jax: 0.10.0
libtpu: 0.0.40
codegen_flags: <defaults>
</compile_context>

<pallas_src>
import jax
import jax.numpy as jnp
from jax.experimental import pallas as pl
from jax.experimental.pallas import tpu as pltpu

LANE = 128  # TPU lane width; all channel dims are zero-padded to a multiple


def _round_up(x, m):
    return ((x + m - 1) // m) * m


def _pad_axis(a, axis, size):
    """Zero-pad `a` along `axis` up to `size` (no-op if already that size)."""
    pad = size - a.shape[axis]
    if pad == 0:
        return a
    widths = [(0, 0)] * a.ndim
    widths[axis] = (0, pad)
    return jnp.pad(a, widths)


# --------------------------------------------------------------------------- #
# Kernel 1: one RGCNConv layer + sigmoid (row-tiled, K-accumulated)
# --------------------------------------------------------------------------- #
def _rgcn_layer_kernel(x_row_ref, adj_ref, z_ref, root_ref, bias_ref,
                       out_ref, acc_ref):
    """One (row tile, K slab) step of: out = sigmoid(x @ root + A_big @ Z + bias).

    A_big[i, r*N + j] = A[r, i, j] (bf16), Z[r*N + j, :] = (x @ W_r)[j, :]
    (bf16, precomputed in the wrapper) -- reassociated form of
    sum_r (A_r @ x) @ W_r.  f32 accumulation in VMEM scratch.
    """
    k = pl.program_id(1)

    @pl.when(k == 0)
    def _():
        # self/root term for this row tile (tiny, exact f32)
        acc_ref[...] = jnp.dot(x_row_ref[...], root_ref[...],
                               preferred_element_type=jnp.float32)

    # dominant term: bf16 x bf16 MXU matmul over this K slab, f32 accumulation
    acc_ref[...] += jnp.dot(adj_ref[...], z_ref[...],
                            preferred_element_type=jnp.float32)

    @pl.when(k == pl.num_programs(1) - 1)
    def _():
        out_ref[...] = jax.nn.sigmoid(acc_ref[...] + bias_ref[...])


def rgcn_conv(x, adj_big, z, root, bias):
    """x: [N, Cin] f32 (lane/row padded); adj_big: [N, R*N] bf16;
    z: [R*N, Cout] bf16 (relation-stacked projections); root: [Cin, Cout];
    bias: [1, Cout]."""
    n, c_in = x.shape
    k_total, c_out = z.shape
    assert adj_big.shape == (n, k_total)
    assert n % 8 == 0, "node count must be padded to a multiple of 8"

    # Row tile: up to 256 (full v7x MXU height / bigger HBM slabs elsewhere).
    tm = min(n, 256)
    while n % tm != 0:
        tm //= 2
    assert tm >= 8 or tm == n

    # K slab: stream the contraction in bounded slabs (VMEM-safe at any N).
    tk = min(k_total, 8192)
    while k_total % tk != 0:
        tk //= 2
    assert tk == k_total or tk % LANE == 0, "K slab must be lane-aligned"

    grid = (n // tm, k_total // tk)

    flops = 2 * n * k_total * c_out + 2 * n * c_in * c_out
    bytes_accessed = (n * k_total * 2                       # bf16 adjacency
                      + (n // tm) * k_total * c_out * 2     # Z re-streamed / row tile
                      + n * c_in * 4 + n * c_out * 4
                      + (c_in * c_out + c_out) * 4)

    # Generous but chip-safe VMEM budget (well under v7x's 64 MiB physical).
    est_vmem = (2 * (tm * c_in * 4 + tm * tk * 2 + tk * c_out * 2 + tm * c_out * 4)
                + c_in * c_out * 4 + c_out * 4 + tm * c_out * 4)
    vmem_limit = int(min(max(2 * est_vmem, 32 * 1024 * 1024), 56 * 1024 * 1024))

    return pl.pallas_call(
        _rgcn_layer_kernel,
        out_shape=jax.ShapeDtypeStruct((n, c_out), jnp.float32),
        grid=grid,
        in_specs=[
            pl.BlockSpec((tm, c_in), lambda i, k: (i, 0)),      # x row tile (root term)
            pl.BlockSpec((tm, tk), lambda i, k: (i, k)),        # adjacency slab (bf16)
            pl.BlockSpec((tk, c_out), lambda i, k: (k, 0)),     # Z slab (bf16)
            pl.BlockSpec((c_in, c_out), lambda i, k: (0, 0)),   # root
            pl.BlockSpec((1, c_out), lambda i, k: (0, 0)),      # bias
        ],
        out_specs=pl.BlockSpec((tm, c_out), lambda i, k: (i, 0)),
        scratch_shapes=[pltpu.VMEM((tm, c_out), jnp.float32)],
        compiler_params=pltpu.CompilerParams(
            dimension_semantics=("parallel", "arbitrary"),
            vmem_limit_bytes=vmem_limit),
        cost_estimate=pl.CostEstimate(
            flops=int(flops), transcendentals=int(n * c_out),
            bytes_accessed=int(bytes_accessed)),
    )(x, adj_big, z, root, bias)


def _relation_proj(x, weight):
    """Z[r*N + j, :] = (x @ W_r)[j, :], cast to bf16 (matches adj_big layout).

    Hoisted out of the conv kernel (perf review): cheap relative to the
    O(R*N^2*Cout) adjacency matmul, and computing it once avoids per-row-tile
    recompute + large in-kernel f32 temporaries.
    """
    z = jnp.einsum('nc,rco->rno', x, weight)
    return z.reshape(-1, weight.shape[-1]).astype(jnp.bfloat16)


# --------------------------------------------------------------------------- #
# Kernel 2: GlobalAttention pooling + graph_linear + sigmoid (single block:
#           everything here is tiny relative to the conv layers)
# --------------------------------------------------------------------------- #
def _attn_pool_kernel(x_ref, mask_ng_ref, mask_gn_ref, w1_ref, b1_ref,
                      gamma_ref, beta_ref, w2_ref, b2_ref, wg_ref, bg_ref,
                      out_ref):
    """GlobalAttention pooling followed by graph_linear + sigmoid.

    The per-graph softmax is applied *after* the weighted sum:
        pooled[g] = (sum_{n in g} e_n * x_n) / (sum_{n in g} e_n),
        e_n = exp(gate_n - max_{m in graph(n)} gate_m),
    so the graph reductions are plain [G,N] x [N,C] MXU matmuls (no in-kernel
    transposes), and empty graphs are guarded against division by zero.
    """
    x = x_ref[...]                                             # [N, C] f32

    # gate_nn: Linear -> BatchNorm1d (batch stats, .train() module) -> ReLU -> Linear
    h = jnp.dot(x, w1_ref[...], preferred_element_type=jnp.float32) + b1_ref[...]
    mu = jnp.mean(h, axis=0, keepdims=True)
    d = h - mu
    var = jnp.mean(d * d, axis=0, keepdims=True)               # two-pass variance
    h = d * jax.lax.rsqrt(var + 1e-5) * gamma_ref[...] + beta_ref[...]
    h = jnp.maximum(h, 0.0)
    gate = jnp.dot(h, w2_ref[...], preferred_element_type=jnp.float32) + b2_ref[...]  # [N,1]

    mask_ng = mask_ng_ref[...].astype(jnp.float32)             # [N, G] one-hot
    mask_gn = mask_gn_ref[...].astype(jnp.float32)             # [G, N] one-hot
    in_graph = mask_ng > 0.0                                   # single compare
    neg = jnp.float32(-1e30)                                   # finite (0*-inf = NaN)
    gm = jnp.where(in_graph, gate, neg)                        # [N, G]
    m = jnp.max(gm, axis=0, keepdims=True)                     # [1, G] per-graph max
    m_node = jnp.sum(mask_ng * m, axis=1, keepdims=True)       # [N, 1] own-graph max
    e = jnp.exp(gate - m_node)                                 # [N, 1] stable weights

    denom = jnp.dot(mask_gn, e, preferred_element_type=jnp.float32)       # [G, 1]
    denom = jnp.maximum(denom, jnp.float32(1e-12))             # empty-graph guard
    pooled = jnp.dot(mask_gn, e * x, preferred_element_type=jnp.float32)  # [G, C]
    pooled = pooled / denom

    out = jnp.dot(pooled, wg_ref[...], preferred_element_type=jnp.float32) + bg_ref[...]
    out_ref[...] = jax.nn.sigmoid(out)                         # [G, 1]


def attn_pool(x, mask_ng, mask_gn, pool_params, graph_linear_params):
    g = mask_gn.shape[0]
    n, c = x.shape
    w1, b1, gamma, beta, w2, b2 = pool_params
    wg, bg = graph_linear_params
    flops = 2 * n * c * c + 2 * n * c + 2 * g * n * (c + 1) + 2 * g * c
    return pl.pallas_call(
        _attn_pool_kernel,
        out_shape=jax.ShapeDtypeStruct((g, 1), jnp.float32),
        in_specs=[pl.BlockSpec(memory_space=pltpu.MemorySpace.VMEM)] * 11,
        out_specs=pl.BlockSpec(memory_space=pltpu.MemorySpace.VMEM),
        cost_estimate=pl.CostEstimate(
            flops=int(flops), transcendentals=int(n * (c + 1)),
            bytes_accessed=int(4 * (n * c + c * c + c) + 2 * 2 * n * g)),
    )(x, mask_ng, mask_gn, w1, b1, gamma, beta, w2, b2, wg, bg)


# --------------------------------------------------------------------------- #
# Parameter init (deterministic, synthetic, *logical* unpadded shapes)
# --------------------------------------------------------------------------- #
def init_params(key, in_embd, layer_embd, out_embd, num_relations):
    ks = jax.random.split(key, 16)

    def glorot(k, shape):
        fan_in, fan_out = shape[-2], shape[-1]
        lim = (6.0 / (fan_in + fan_out)) ** 0.5
        return jax.random.uniform(k, shape, jnp.float32, -lim, lim)

    emb_sizes = [33, 5, 3, 4, 2, 3]
    embeddings = [jax.random.normal(ks[i], (emb_sizes[i], in_embd), jnp.float32)
                  for i in range(6)]

    c1_in = 6 * in_embd
    conv1 = dict(weight=glorot(ks[6], (num_relations, c1_in, layer_embd)),
                 root=glorot(ks[7], (c1_in, layer_embd)),
                 bias=jnp.zeros((1, layer_embd), jnp.float32))
    conv2 = dict(weight=glorot(ks[8], (num_relations, layer_embd, out_embd)),
                 root=glorot(ks[9], (layer_embd, out_embd)),
                 bias=jnp.zeros((1, out_embd), jnp.float32))

    pool = (glorot(ks[10], (out_embd, out_embd)),          # gate Linear1 W
            jnp.zeros((1, out_embd), jnp.float32),         # gate Linear1 b
            jnp.ones((1, out_embd), jnp.float32),          # BatchNorm1d gamma
            jnp.zeros((1, out_embd), jnp.float32),         # BatchNorm1d beta
            glorot(ks[11], (out_embd, 1)),                 # gate Linear2 W
            jnp.zeros((1, 1), jnp.float32))                # gate Linear2 b
    graph_linear = (glorot(ks[12], (out_embd, 1)),
                    jnp.zeros((1, 1), jnp.float32))

    return dict(emb=embeddings, conv1=conv1, conv2=conv2,
                pool=pool, graph_linear=graph_linear)


# --------------------------------------------------------------------------- #
# Full RGCN forward (glue in plain JAX, hot path in Pallas kernels)
# --------------------------------------------------------------------------- #
def rgcn_forward(params, x_cat, edge_index, edge_type, batch,
                 num_relations, num_graphs):
    n = x_cat.shape[0]
    # Row padding so tiles divide evenly; padded rows/cols are zero in the
    # adjacency, so they never leak into real outputs (exact) and are sliced
    # off before pooling.
    n_pad = _round_up(n, 8) if n <= 256 else _round_up(n, 128)

    # 6 categorical embedding lookups concatenated along channels (gather glue)
    x_ = jnp.concatenate([params['emb'][i][x_cat[:, i]] for i in range(6)], axis=1)

    # Dense mean-normalized adjacency built DIRECTLY in its final layout:
    #   adj_big[i, r*n + j] = 1/deg_r(i)  for every edge j -> i of relation r.
    adj3 = jnp.zeros((n_pad, num_relations, n_pad), jnp.float32)
    adj3 = adj3.at[edge_index[1], edge_type, edge_index[0]].add(1.0)
    deg = jnp.sum(adj3, axis=2, keepdims=True)                  # [n_pad, R, 1]
    adj3 = adj3 / jnp.maximum(deg, 1.0)
    adj_big = adj3.reshape(n_pad, num_relations * n_pad).astype(jnp.bfloat16)

    # Zero-pad all channel dims to the 128-lane width (exact: padded weight
    # rows/cols are zero, so padded activation columns never affect real ones).
    c1p = _round_up(x_.shape[1], LANE)
    c2p = _round_up(params['conv1']['root'].shape[1], LANE)
    c3p = _round_up(params['conv2']['root'].shape[1], LANE)

    x_p = _pad_axis(_pad_axis(x_, 1, c1p), 0, n_pad)
    w1c = _pad_axis(_pad_axis(params['conv1']['weight'], 1, c1p), 2, c2p)
    r1c = _pad_axis(_pad_axis(params['conv1']['root'], 0, c1p), 1, c2p)
    b1c = _pad_axis(params['conv1']['bias'], 1, c2p)
    w2c = _pad_axis(_pad_axis(params['conv2']['weight'], 1, c2p), 2, c3p)
    r2c = _pad_axis(_pad_axis(params['conv2']['root'], 0, c2p), 1, c3p)
    b2c = _pad_axis(params['conv2']['bias'], 1, c3p)

    # Hoisted relation-stacked projections (bf16) + the two conv kernels.
    z1 = _relation_proj(x_p, w1c)
    h = rgcn_conv(x_p, adj_big, z1, r1c, b1c)
    z2 = _relation_proj(h, w2c)
    h = rgcn_conv(h, adj_big, z2, r2c, b2c)
    h = h[:n]                                                   # drop padded rows

    pw1, pb1, pg, pbt, pw2, pb2 = params['pool']
    pool_p = (_pad_axis(_pad_axis(pw1, 0, c3p), 1, c3p),
              _pad_axis(pb1, 1, c3p),
              _pad_axis(pg, 1, c3p),
              _pad_axis(pbt, 1, c3p),
              _pad_axis(pw2, 0, c3p),
              pb2)
    gw, gb = params['graph_linear']
    gl_p = (_pad_axis(gw, 0, c3p), gb)

    gid = jnp.arange(num_graphs)
    mask_ng = (batch[:, None] == gid[None, :]).astype(jnp.bfloat16)   # [N, G]
    mask_gn = (gid[:, None] == batch[None, :]).astype(jnp.bfloat16)   # [G, N]

    return attn_pool(h, mask_ng, mask_gn, pool_p, gl_p)               # [G, 1]


# --------------------------------------------------------------------------- #
# Pure-JAX reference (unpadded, per-relation loop) for correctness checking.
# Mirrors the kernels' intentional bf16 rounding of the adjacency and of Z.
# --------------------------------------------------------------------------- #
def rgcn_forward_ref(params, x_cat, edge_index, edge_type, batch,
                     num_relations, num_graphs):
    n = x_cat.shape[0]
    x_ = jnp.concatenate([params['emb'][i][x_cat[:, i]] for i in range(6)], axis=1)
    adj = jnp.zeros((num_relations, n, n), jnp.float32)
    adj = adj.at[edge_type, edge_index[1], edge_index[0]].add(1.0)
    deg = jnp.sum(adj, axis=2, keepdims=True)
    adj = adj / jnp.maximum(deg, 1.0)
    adj = adj.astype(jnp.bfloat16).astype(jnp.float32)         # mirror kernel

    def layer(x, p):
        acc = x @ p['root'] + p['bias']
        for r in range(num_relations):
            z_r = (x @ p['weight'][r]).astype(jnp.bfloat16).astype(jnp.float32)
            acc = acc + adj[r] @ z_r
        return jax.nn.sigmoid(acc)

    h = layer(x_, params['conv1'])
    h = layer(h, params['conv2'])

    w1, b1, gamma, beta, w2, b2 = params['pool']
    hh = h @ w1 + b1
    mu = hh.mean(axis=0, keepdims=True)
    var = ((hh - mu) ** 2).mean(axis=0, keepdims=True)
    hh = jnp.maximum((hh - mu) * jax.lax.rsqrt(var + 1e-5) * gamma + beta, 0.0)
    gate = hh @ w2 + b2                                        # [N, 1]

    mask = (batch[:, None] == jnp.arange(num_graphs)[None, :]).astype(jnp.float32)
    gm = jnp.where(mask > 0, gate, -1e30)
    m = jnp.max(gm, axis=0, keepdims=True)
    e = jnp.where(mask > 0, jnp.exp(gm - m), 0.0)
    w_att = e / jnp.maximum(jnp.sum(e, axis=0, keepdims=True), 1e-12)
    pooled = w_att.T @ h
    wg, bg = params['graph_linear']
    return jax.nn.sigmoid(pooled @ wg + bg)


if __name__ == "__main__":
    in_embd, layer_embd, out_embd = 8, 32, 16
    num_relations = 3
    dropout = 0.1  # unused in forward (as in the PyTorch module)
    N, E, G = 32, 64, 2

    key = jax.random.PRNGKey(0)
    kp, kx, ke, kt = jax.random.split(key, 4)
    params = init_params(kp, in_embd, layer_embd, out_embd, num_relations)

    emb_sizes = [33, 5, 3, 4, 2, 3]
    kxs = jax.random.split(kx, 6)
    x_cat = jnp.stack([jax.random.randint(kxs[i], (N,), 0, emb_sizes[i])
                       for i in range(6)], axis=1)            # [N, 6] category ids
    edge_index = jax.random.randint(ke, (2, E), 0, N)         # [2, E] (src, dst)
    edge_type = jax.random.randint(kt, (E,), 0, num_relations)  # [E]
    batch = jnp.concatenate([jnp.zeros(N // 2, jnp.int32),
                             jnp.ones(N - N // 2, jnp.int32)])   # [N] graph ids

    fwd = jax.jit(rgcn_forward, static_argnums=(5, 6))
    out = fwd(params, x_cat, edge_index, edge_type, batch, num_relations, G)
    out = jax.block_until_ready(out)

    ref = rgcn_forward_ref(params, x_cat, edge_index, edge_type, batch,
                           num_relations, G)

    assert out.shape == (G, 1)
    assert bool(jnp.all(jnp.isfinite(out)))
    max_diff = float(jnp.max(jnp.abs(out - ref)))
    assert max_diff < 5e-2, f"kernel vs reference mismatch: max abs diff {max_diff}"
    print("KERNEL_OK")
</pallas_src>

<mosaic_0001>
module attributes {stable_mosaic.version = 11 : i64} {
  func.func private @main(%arg0: i32) attributes {dimension_semantics = [#tpu.dimension_semantics<core_parallel>], iteration_bounds = array<i64: 2>, tpu.core_type = #tpu.core_type<sc_scalar_subcore>, window_params = []} {
    return
  }
}

module attributes {stable_mosaic.version = 11 : i64} {
  func.func private @main(%arg0: i32) attributes {dimension_semantics = [#tpu.dimension_semantics<core_parallel>], iteration_bounds = array<i64: 2>, tpu.core_type = #tpu.core_type<sc_scalar_subcore>, window_params = []} {
    return
  }
}

module attributes {stable_mosaic.version = 11 : i64} {
  func.func @_rgcn_layer_kernel(%arg0: i32, %arg1: i32, %arg2: memref<32x128xf32, #tpu.memory_space<vmem>>, %arg3: memref<32x96xbf16, #tpu.memory_space<vmem>>, %arg4: memref<96x128xbf16, #tpu.memory_space<vmem>>, %arg5: memref<128x128xf32, #tpu.memory_space<vmem>>, %arg6: memref<1x128xf32, #tpu.memory_space<vmem>>, %arg7: memref<32x128xf32, #tpu.memory_space<vmem>>, %arg8: memref<32x128xf32, #tpu.memory_space<vmem>>) attributes {dimension_semantics = [#tpu.dimension_semantics<parallel>, #tpu.dimension_semantics<arbitrary>], iteration_bounds = array<i64: 1, 1>, scalar_prefetch = 0 : i64, scratch_operands = 1 : i64, tpu.core_type = #tpu.core_type<tc>, window_params = [{transform_indices = @transform_0, window_bounds = array<i64: 32, 128>}, {transform_indices = @transform_1, window_bounds = array<i64: 32, 96>}, {transform_indices = @transform_2, window_bounds = array<i64: 96, 128>}, {pipeline_mode = #tpu.pipeline_mode<synchronous>, transform_indices = @transform_3, window_bounds = array<i64: 128, 128>}, {pipeline_mode = #tpu.pipeline_mode<synchronous>, transform_indices = @transform_4, window_bounds = array<i64: 1, 128>}, {transform_indices = @transform_5, window_bounds = array<i64: 32, 128>}]} {
    %c0_i32 = arith.constant 0 : i32
    %0 = arith.cmpi eq, %arg1, %c0_i32 : i32
    %1 = arith.extui %0 : i1 to i32
    %c0_i32_0 = arith.constant 0 : i32
    %2 = arith.cmpi ne, %1, %c0_i32_0 : i32
    scf.if %2 {
      %c0_10 = arith.constant 0 : index
      %c0_11 = arith.constant 0 : index
      %12 = vector.load %arg2[%c0_10, %c0_11] : memref<32x128xf32, #tpu.memory_space<vmem>>, vector<32x128xf32>
      %c0_12 = arith.constant 0 : index
      %c0_13 = arith.constant 0 : index
      %13 = vector.load %arg5[%c0_12, %c0_13] : memref<128x128xf32, #tpu.memory_space<vmem>>, vector<128x128xf32>
      %cst_14 = arith.constant dense<0.000000e+00> : vector<32x128xf32>
      %14 = tpu.matmul %12, %13, %cst_14 {dimension_numbers = #tpu.dot_dimension_numbers<[1], [0], [0], [1], [0, 0, 1, 1], [], []>} : vector<32x128xf32>, vector<128x128xf32>, vector<32x128xf32> -> vector<32x128xf32>
      %c0_15 = arith.constant 0 : index
      %c0_16 = arith.constant 0 : index
      %15 = vector.load %arg8[%c0_15, %c0_16] : memref<32x128xf32, #tpu.memory_space<vmem>>, vector<32x128xf32>
      tpu.vector_store %arg8[%c0_15, %c0_16], %14 {strides = array<i32>} : memref<32x128xf32, #tpu.memory_space<vmem>>, vector<32x128xf32>,
    } else {
    }
    %c0 = arith.constant 0 : index
    %c0_1 = arith.constant 0 : index
    %3 = vector.load %arg8[%c0, %c0_1] : memref<32x128xf32, #tpu.memory_space<vmem>>, vector<32x128xf32>
    %c0_2 = arith.constant 0 : index
    %c0_3 = arith.constant 0 : index
    %4 = vector.load %arg3[%c0_2, %c0_3] : memref<32x96xbf16, #tpu.memory_space<vmem>>, vector<32x96xbf16>
    %c0_4 = arith.constant 0 : index
    %c0_5 = arith.constant 0 : index
    %5 = vector.load %arg4[%c0_4, %c0_5] : memref<96x128xbf16, #tpu.memory_space<vmem>>, vector<96x128xbf16>
    %cst = arith.constant dense<0.000000e+00> : vector<32x128xf32>
    %6 = tpu.matmul %4, %5, %cst {dimension_numbers = #tpu.dot_dimension_numbers<[1], [0], [0], [1], [0, 0, 1, 1], [], []>} : vector<32x96xbf16>, vector<96x128xbf16>, vector<32x128xf32> -> vector<32x128xf32>
    %7 = arith.addf %3, %6 : vector<32x128xf32>
    %c0_6 = arith.constant 0 : index
    %c0_7 = arith.constant 0 : index
    %8 = vector.load %arg8[%c0_6, %c0_7] : memref<32x128xf32, #tpu.memory_space<vmem>>, vector<32x128xf32>
    tpu.vector_store %arg8[%c0_6, %c0_7], %7 {strides = array<i32>} : memref<32x128xf32, #tpu.memory_space<vmem>>, vector<32x128xf32>,
    %c0_i32_8 = arith.constant 0 : i32
    %9 = arith.cmpi eq, %arg1, %c0_i32_8 : i32
    %10 = arith.extui %9 : i1 to i32
    %c0_i32_9 = arith.constant 0 : i32
    %11 = arith.cmpi ne, %10, %c0_i32_9 : i32
    scf.if %11 {
      %c0_10 = arith.constant 0 : index
      %c0_11 = arith.constant 0 : index
      %12 = vector.load %arg8[%c0_10, %c0_11] : memref<32x128xf32, #tpu.memory_space<vmem>>, vector<32x128xf32>
      %c0_12 = arith.constant 0 : index
      %c0_13 = arith.constant 0 : index
      %13 = vector.load %arg6[%c0_12, %c0_13] : memref<1x128xf32, #tpu.memory_space<vmem>>, vector<1x128xf32>
      %14 = vector.broadcast %13 : vector<1x128xf32> to vector<32x128xf32>
      %15 = arith.addf %12, %14 : vector<32x128xf32>
      %16 = arith.negf %15 : vector<32x128xf32>
      %17 = math.exp %16 : vector<32x128xf32>
      %cst_14 = arith.constant 1.000000e+00 : f32
      %18 = vector.broadcast %cst_14 : f32 to vector<32x128xf32>
      %19 = arith.addf %18, %17 : vector<32x128xf32>
      %20 = arith.divf %18, %19 : vector<32x128xf32>
      %c0_15 = arith.constant 0 : index
      %c0_16 = arith.constant 0 : index
      %21 = vector.load %arg7[%c0_15, %c0_16] : memref<32x128xf32, #tpu.memory_space<vmem>>, vector<32x128xf32>
      tpu.vector_store %arg7[%c0_15, %c0_16], %20 {strides = array<i32>} : memref<32x128xf32, #tpu.memory_space<vmem>>, vector<32x128xf32>,
    } else {
    }
    return
  }
  func.func @transform_0(%arg0: i32, %arg1: i32) -> (i32, i32) {
    %c0_i32 = arith.constant 0 : i32
    %c0_i32_0 = arith.constant 0 : i32
    return %arg0, %c0_i32 : i32, i32
  }
  func.func @transform_1(%arg0: i32, %arg1: i32) -> (i32, i32) {
    %c0_i32 = arith.constant 0 : i32
    return %arg0, %arg1 : i32, i32
  }
  func.func @transform_2(%arg0: i32, %arg1: i32) -> (i32, i32) {
    %c0_i32 = arith.constant 0 : i32
    %c0_i32_0 = arith.constant 0 : i32
    return %arg1, %c0_i32 : i32, i32
  }
  func.func @transform_3(%arg0: i32, %arg1: i32) -> (i32, i32) {
    %c0_i32 = arith.constant 0 : i32
    %c0_i32_0 = arith.constant 0 : i32
    %c0_i32_1 = arith.constant 0 : i32
    return %c0_i32, %c0_i32_0 : i32, i32
  }
  func.func @transform_4(%arg0: i32, %arg1: i32) -> (i32, i32) {
    %c0_i32 = arith.constant 0 : i32
    %c0_i32_0 = arith.constant 0 : i32
    %c0_i32_1 = arith.constant 0 : i32
    return %c0_i32, %c0_i32_0 : i32, i32
  }
  func.func @transform_5(%arg0: i32, %arg1: i32) -> (i32, i32) {
    %c0_i32 = arith.constant 0 : i32
    %c0_i32_0 = arith.constant 0 : i32
    return %arg0, %c0_i32 : i32, i32
  }
}

module attributes {stable_mosaic.version = 11 : i64} {
  func.func @_attn_pool_kernel(%arg0: memref<32x128xf32, #tpu.memory_space<vmem>>, %arg1: memref<32x2xbf16, #tpu.memory_space<vmem>>, %arg2: memref<2x32xbf16, #tpu.memory_space<vmem>>, %arg3: memref<128x128xf32, #tpu.memory_space<vmem>>, %arg4: memref<1x128xf32, #tpu.memory_space<vmem>>, %arg5: memref<1x128xf32, #tpu.memory_space<vmem>>, %arg6: memref<1x128xf32, #tpu.memory_space<vmem>>, %arg7: memref<128x1xf32, #tpu.memory_space<vmem>>, %arg8: memref<1x1xf32, #tpu.memory_space<vmem>>, %arg9: memref<128x1xf32, #tpu.memory_space<vmem>>, %arg10: memref<1x1xf32, #tpu.memory_space<vmem>>, %arg11: memref<2x1xf32, #tpu.memory_space<vmem>>) attributes {dimension_semantics = [], scalar_prefetch = 0 : i64, scratch_operands = 0 : i64, tpu.core_type = #tpu.core_type<tc>} {
    %c0 = arith.constant 0 : index
    %c0_0 = arith.constant 0 : index
    %0 = vector.load %arg0[%c0, %c0_0] : memref<32x128xf32, #tpu.memory_space<vmem>>, vector<32x128xf32>
    %c0_1 = arith.constant 0 : index
    %c0_2 = arith.constant 0 : index
    %1 = vector.load %arg3[%c0_1, %c0_2] : memref<128x128xf32, #tpu.memory_space<vmem>>, vector<128x128xf32>
    %cst = arith.constant dense<0.000000e+00> : vector<32x128xf32>
    %2 = tpu.matmul %0, %1, %cst {dimension_numbers = #tpu.dot_dimension_numbers<[1], [0], [0], [1], [0, 0, 1, 1], [], []>} : vector<32x128xf32>, vector<128x128xf32>, vector<32x128xf32> -> vector<32x128xf32>
    %c0_3 = arith.constant 0 : index
    %c0_4 = arith.constant 0 : index
    %3 = vector.load %arg4[%c0_3, %c0_4] : memref<1x128xf32, #tpu.memory_space<vmem>>, vector<1x128xf32>
    %4 = vector.broadcast %3 : vector<1x128xf32> to vector<32x128xf32>
    %5 = arith.addf %2, %4 : vector<32x128xf32>
    %cst_5 = arith.constant dense<0.000000e+00> : vector<128xf32>
    %6 = vector.multi_reduction <add>, %5, %cst_5 [0] : vector<32x128xf32> to vector<128xf32>
    %7 = vector.shape_cast %6 : vector<128xf32> to vector<1x128xf32>
    %cst_6 = arith.constant 3.200000e+01 : f32
    %8 = vector.broadcast %cst_6 : f32 to vector<1x128xf32>
    %9 = arith.divf %7, %8 : vector<1x128xf32>
    %10 = vector.broadcast %9 : vector<1x128xf32> to vector<32x128xf32>
    %11 = arith.subf %5, %10 : vector<32x128xf32>
    %12 = arith.mulf %11, %11 : vector<32x128xf32>
    %cst_7 = arith.constant dense<0.000000e+00> : vector<128xf32>
    %13 = vector.multi_reduction <add>, %12, %cst_7 [0] : vector<32x128xf32> to vector<128xf32>
    %14 = vector.shape_cast %13 : vector<128xf32> to vector<1x128xf32>
    %cst_8 = arith.constant 3.200000e+01 : f32
    %15 = vector.broadcast %cst_8 : f32 to vector<1x128xf32>
    %16 = arith.divf %14, %15 : vector<1x128xf32>
    %cst_9 = arith.constant 9.99999974E-6 : f32
    %17 = vector.broadcast %cst_9 : f32 to vector<1x128xf32>
    %18 = arith.addf %16, %17 : vector<1x128xf32>
    %19 = math.rsqrt %18 : vector<1x128xf32>
    %20 = vector.broadcast %19 : vector<1x128xf32> to vector<32x128xf32>
    %21 = arith.mulf %11, %20 : vector<32x128xf32>
    %c0_10 = arith.constant 0 : index
    %c0_11 = arith.constant 0 : index
    %22 = vector.load %arg5[%c0_10, %c0_11] : memref<1x128xf32, #tpu.memory_space<vmem>>, vector<1x128xf32>
    %23 = vector.broadcast %22 : vector<1x128xf32> to vector<32x128xf32>
    %24 = arith.mulf %21, %23 : vector<32x128xf32>
    %c0_12 = arith.constant 0 : index
    %c0_13 = arith.constant 0 : index
    %25 = vector.load %arg6[%c0_12, %c0_13] : memref<1x128xf32, #tpu.memory_space<vmem>>, vector<1x128xf32>
    %26 = vector.broadcast %25 : vector<1x128xf32> to vector<32x128xf32>
    %27 = arith.addf %24, %26 : vector<32x128xf32>
    %cst_14 = arith.constant 0.000000e+00 : f32
    %28 = vector.broadcast %cst_14 : f32 to vector<32x128xf32>
    %29 = arith.maximumf %27, %28 : vector<32x128xf32>
    %c0_15 = arith.constant 0 : index
    %c0_16 = arith.constant 0 : index
    %30 = vector.load %arg7[%c0_15, %c0_16] : memref<128x1xf32, #tpu.memory_space<vmem>>, vector<128x1xf32>
    %cst_17 = arith.constant dense<0.000000e+00> : vector<32x1xf32>
    %31 = tpu.matmul %29, %30, %cst_17 {dimension_numbers = #tpu.dot_dimension_numbers<[1], [0], [0], [1], [0, 0, 1, 1], [], []>} : vector<32x128xf32>, vector<128x1xf32>, vector<32x1xf32> -> vector<32x1xf32>
    %c0_18 = arith.constant 0 : index
    %c0_19 = arith.constant 0 : index
    %32 = vector.load %arg8[%c0_18, %c0_19] : memref<1x1xf32, #tpu.memory_space<vmem>>, vector<1x1xf32>
    %33 = vector.broadcast %32 : vector<1x1xf32> to vector<32x1xf32>
    %34 = arith.addf %31, %33 : vector<32x1xf32>
    %c0_20 = arith.constant 0 : index
    %c0_21 = arith.constant 0 : index
    %35 = vector.load %arg1[%c0_20, %c0_21] : memref<32x2xbf16, #tpu.memory_space<vmem>>, vector<32x2xbf16>
    %36 = arith.extf %35 : vector<32x2xbf16> to vector<32x2xf32>
    %c0_22 = arith.constant 0 : index
    %c0_23 = arith.constant 0 : index
    %37 = vector.load %arg2[%c0_22, %c0_23] : memref<2x32xbf16, #tpu.memory_space<vmem>>, vector<2x32xbf16>
    %38 = arith.extf %37 : vector<2x32xbf16> to vector<2x32xf32>
    %cst_24 = arith.constant 0.000000e+00 : f32
    %39 = vector.broadcast %cst_24 : f32 to vector<32x2xf32>
    %40 = arith.cmpf ogt, %36, %39 : vector<32x2xf32>
    %cst_25 = arith.constant -1.000000e+30 : f32
    %41 = vector.shape_cast %34 : vector<32x1xf32> to vector<32x1xf32>
    %42 = vector.broadcast %41 : vector<32x1xf32> to vector<32x2xf32>
    %43 = vector.broadcast %cst_25 : f32 to vector<32x2xf32>
    %44 = arith.select %40, %42, %43 : vector<32x2xi1>, vector<32x2xf32>
    %cst_26 = arith.constant dense<0xFF800000> : vector<2xf32>
    %45 = vector.multi_reduction <maximumf>, %44, %cst_26 [0] : vector<32x2xf32> to vector<2xf32>
    %46 = vector.shape_cast %45 : vector<2xf32> to vector<1x2xf32>
    %47 = vector.broadcast %46 : vector<1x2xf32> to vector<32x2xf32>
    %48 = arith.mulf %36, %47 : vector<32x2xf32>
    %cst_27 = arith.constant dense<0.000000e+00> : vector<32xf32>
    %49 = vector.multi_reduction <add>, %48, %cst_27 [1] : vector<32x2xf32> to vector<32xf32>
    %50 = vector.shape_cast %49 : vector<32xf32> to vector<32x1xf32>
    %51 = arith.subf %34, %50 : vector<32x1xf32>
    %52 = math.exp %51 : vector<32x1xf32>
    %cst_28 = arith.constant dense<0.000000e+00> : vector<2x1xf32>
    %53 = tpu.matmul %38, %52, %cst_28 {dimension_numbers = #tpu.dot_dimension_numbers<[1], [0], [0], [1], [0, 0, 1, 1], [], []>} : vector<2x32xf32>, vector<32x1xf32>, vector<2x1xf32> -> vector<2x1xf32>
    %cst_29 = arith.constant 9.99999996E-13 : f32
    %54 = vector.broadcast %cst_29 : f32 to vector<2x1xf32>
    %55 = arith.maximumf %53, %54 : vector<2x1xf32>
    %56 = vector.broadcast %52 : vector<32x1xf32> to vector<32x128xf32>
    %57 = arith.mulf %56, %0 : vector<32x128xf32>
    %cst_30 = arith.constant dense<0.000000e+00> : vector<2x128xf32>
    %58 = tpu.matmul %38, %57, %cst_30 {dimension_numbers = #tpu.dot_dimension_numbers<[1], [0], [0], [1], [0, 0, 1, 1], [], []>} : vector<2x32xf32>, vector<32x128xf32>, vector<2x128xf32> -> vector<2x128xf32>
    %59 = vector.broadcast %55 : vector<2x1xf32> to vector<2x128xf32>
    %60 = arith.divf %58, %59 : vector<2x128xf32>
    %c0_31 = arith.constant 0 : index
    %c0_32 = arith.constant 0 : index
    %61 = vector.load %arg9[%c0_31, %c0_32] : memref<128x1xf32, #tpu.memory_space<vmem>>, vector<128x1xf32>
    %cst_33 = arith.constant dense<0.000000e+00> : vector<2x1xf32>
    %62 = tpu.matmul %60, %61, %cst_33 {dimension_numbers = #tpu.dot_dimension_numbers<[1], [0], [0], [1], [0, 0, 1, 1], [], []>} : vector<2x128xf32>, vector<128x1xf32>, vector<2x1xf32> -> vector<2x1xf32>
    %c0_34 = arith.constant 0 : index
    %c0_35 = arith.constant 0 : index
    %63 = vector.load %arg10[%c0_34, %c0_35] : memref<1x1xf32, #tpu.memory_space<vmem>>, vector<1x1xf32>
    %64 = vector.broadcast %63 : vector<1x1xf32> to vector<2x1xf32>
    %65 = arith.addf %62, %64 : vector<2x1xf32>
    %66 = arith.negf %65 : vector<2x1xf32>
    %67 = math.exp %66 : vector<2x1xf32>
    %cst_36 = arith.constant 1.000000e+00 : f32
    %68 = vector.broadcast %cst_36 : f32 to vector<2x1xf32>
    %69 = arith.addf %68, %67 : vector<2x1xf32>
    %70 = arith.divf %68, %69 : vector<2x1xf32>
    %c0_37 = arith.constant 0 : index
    %c0_38 = arith.constant 0 : index
    %71 = vector.load %arg11[%c0_37, %c0_38] : memref<2x1xf32, #tpu.memory_space<vmem>>, vector<2x1xf32>
    tpu.vector_store %arg11[%c0_37, %c0_38], %70 {strides = array<i32>} : memref<2x1xf32, #tpu.memory_space<vmem>>, vector<2x1xf32>,
    return
  }
}

</mosaic_0001>

<llo_original>
// kernel: rgcn_forward.3
$region0: #{rgcn_forward.3}
  #allocation0 [shape = 'u32[]', space=smem, size = 0x4, offset = 0x4, fixed_abs, tag = 'smem constant byte address 0x4 - core index']
  #allocation1 [shape = 'u32[144,128]{1,0:T(1,128)}', space=vmem, size = 0x12000, scoped, tag = 'internal scratch']
  #allocation2 [shape = 'f32[32,128]{1,0:T(8,128)}', space=vmem, size = 0x4000, scoped, tag = 'scratch operand']
  %s0 = inlined_call_operand.vmem [shape: f32[32,128], index: 0, kind: input, shape index: {}]
  %s1 = inlined_call_operand.vmem [shape: bf16[32,96], index: 1, kind: input, shape index: {}]
  %s2 = inlined_call_operand.vmem [shape: bf16[96,128], index: 2, kind: input, shape index: {}]
  %s3 = inlined_call_operand.vmem [shape: f32[128,128], index: 3, kind: input, shape index: {}]
  %s4 = inlined_call_operand.vmem [shape: f32[1,128], index: 4, kind: input, shape index: {}]
  %s5 = inlined_call_operand.vmem [shape: f32[32,128], index: 5, kind: output, shape index: {}]
  %s6 = sld [smem:[#allocation0]]
  $region38: #{rgcn_forward.3} parent=0
    _
  %s8 = ssub.s32 1, %s6
  %s9 = scalar_select 0, %s8, %s6
  // Predicated region
  $region2: #{rgcn_forward.3} parent=0 // pred_check
    _
  $region3: #{rgcn_forward.3} parent=0 // pred_check_branch
    %11 = sbr.rel (0) target = $region5
  $region4: #{rgcn_forward.3} parent=0 // pred_region
    _
  $region5: #{rgcn_forward.3} parent=0 // pred_fallthru
    _
  // Predicated region
  $region6: #{rgcn_forward.3} parent=0 // pred_check
    _
  $region7: #{rgcn_forward.3} parent=0 // pred_check_branch
    %13 = sbr.rel (0) target = $region9
  $region8: #{rgcn_forward.3} parent=0 // pred_region
    _
  $region9: #{rgcn_forward.3} parent=0 // pred_fallthru
    _
  // Predicated region
  $region10: #{rgcn_forward.3} parent=0 // pred_check
    _
  $region11: #{rgcn_forward.3} parent=0 // pred_check_branch
    %15 = sbr.rel (0) target = $region13
  $region12: #{rgcn_forward.3} parent=0 // pred_region
    _
  $region13: #{rgcn_forward.3} parent=0 // pred_fallthru
    _
  // Predicated region
  $region14: #{rgcn_forward.3} parent=0 // pred_check
    _
  $region15: #{rgcn_forward.3} parent=0 // pred_check_branch
    %17 = sbr.rel (0) target = $region17
  $region16: #{rgcn_forward.3} parent=0 // pred_region
    _
  $region17: #{rgcn_forward.3} parent=0 // pred_fallthru
    _
  // Predicated region
  $region18: #{rgcn_forward.3} parent=0 // pred_check
    _
  $region19: #{rgcn_forward.3} parent=0 // pred_check_branch
    %19 = sbr.rel (0) target = $region21
  $region20: #{rgcn_forward.3} parent=0 // pred_region
    _
  $region21: #{rgcn_forward.3} parent=0 // pred_fallthru
    _
  %p21 = scmp.eq.s32.totalorder 0, 0
  // Predicated region
  $region22: #{rgcn_forward.3} parent=0 // pred_check
    %p22 = pneg %p21
  $region23: #{rgcn_forward.3} parent=0 // pred_check_branch
    %24 = sbr.rel (%p22) target = $region25
  $region24: #{rgcn_forward.3} parent=0 // pred_region
    %v25 = vld [vmem:[%s0] sm:$0xff]
    %v26 = vld [vmem:[%s0 + $0x8] sm:$0xff]
    %v27 = vld [vmem:[%s0 + $0x10] sm:$0xff]
    %v28 = vld [vmem:[%s0 + $0x18] sm:$0xff]
    %v29 = vld [vmem:[%s3] sm:$0xff]
    %v30 = vld [vmem:[%s3 + $0x8] sm:$0xff]
    %v31 = vld [vmem:[%s3 + $0x10] sm:$0xff]
    %v32 = vld [vmem:[%s3 + $0x18] sm:$0xff]
    %v33 = vld [vmem:[%s3 + $0x20] sm:$0xff]
    %v34 = vld [vmem:[%s3 + $0x28] sm:$0xff]
    %v35 = vld [vmem:[%s3 + $0x30] sm:$0xff]
    %v36 = vld [vmem:[%s3 + $0x38] sm:$0xff]
    %v37 = vld [vmem:[%s3 + $0x40] sm:$0xff]
    %v38 = vld [vmem:[%s3 + $0x48] sm:$0xff]
    %v39 = vld [vmem:[%s3 + $0x50] sm:$0xff]
    %v40 = vld [vmem:[%s3 + $0x58] sm:$0xff]
    %v41 = vld [vmem:[%s3 + $0x60] sm:$0xff]
    %v42 = vld [vmem:[%s3 + $0x68] sm:$0xff]
    %v43 = vld [vmem:[%s3 + $0x70] sm:$0xff]
    %v44 = vld [vmem:[%s3 + $0x78] sm:$0xff]
    %45 = vmatprep.subr.mxu0 0.0
    %46 = vmatpush1.msra.mxu0 %v44
    %47 = vmatprep.subr.mxu0 0.0
    %48 = vmatpush1.msra.mxu0 %v43
    %49 = vmatprep.subr.mxu0 0.0
    %50 = vmatpush1.msra.mxu0 %v42
    %51 = vmatprep.subr.mxu0 0.0
    %52 = vmatpush1.msra.mxu0 %v41
    %53 = vmatprep.subr.mxu0 0.0
    %54 = vmatpush1.msra.mxu0 %v40
    %55 = vmatprep.subr.mxu0 0.0
    %56 = vmatpush1.msra.mxu0 %v39
    %57 = vmatprep.subr.mxu0 0.0
    %58 = vmatpush1.msra.mxu0 %v38
    %59 = vmatprep.subr.mxu0 0.0
    %60 = vmatpush1.msra.mxu0 %v37
    %61 = vmatprep.subr.mxu0 0.0
    %62 = vmatpush1.msra.mxu0 %v36
    %63 = vmatprep.subr.mxu0 0.0
    %64 = vmatpush1.msra.mxu0 %v35
    %65 = vmatprep.subr.mxu0 0.0
    %66 = vmatpush1.msra.mxu0 %v34
    %67 = vmatprep.subr.mxu0 0.0
    %68 = vmatpush1.msra.mxu0 %v33
    %69 = vmatprep.subr.mxu0 0.0
    %70 = vmatpush1.msra.mxu0 %v32
    %71 = vmatprep.subr.mxu0 0.0
    %72 = vmatpush1.msra.mxu0 %v31
    %73 = vmatprep.subr.mxu0 0.0
    %74 = vmatpush1.msra.mxu0 %v30
    %75 = vmatprep.subr.mxu0 0.0
    %76 = vmatpush1.msra.mxu0 %v29
    %77 = vmatprep.subr.mxu0 0.0
    %78 = vmatpush2.msra.mxu0 0.0
    %79 = vmatprep.subr.mxu0 0.0
    %80 = vmatpush2.msra.mxu0 0.0
    %81 = vmatprep.subr.mxu0 0.0
    %82 = vmatpush2.msra.mxu0 0.0
    %83 = vmatprep.subr.mxu0 0.0
    %84 = vmatpush2.msra.mxu0 0.0
    %85 = vmatprep.subr.mxu0 0.0
    %86 = vmatpush2.msra.mxu0 0.0
    %87 = vmatprep.subr.mxu0 0.0
    %88 = vmatpush2.msra.mxu0 0.0
    %89 = vmatprep.subr.mxu0 0.0
    %90 = vmatpush2.msra.mxu0 0.0
    %91 = vmatprep.subr.mxu0 0.0
    %92 = vmatpush2.msra.mxu0 0.0
    %93 = vmatprep.subr.mxu0 0.0
    %94 = vmatpush2.msra.mxu0 0.0
    %95 = vmatprep.subr.mxu0 0.0
    %96 = vmatpush2.msra.mxu0 0.0
    %97 = vmatprep.subr.mxu0 0.0
    %98 = vmatpush2.msra.mxu0 0.0
    %99 = vmatprep.subr.mxu0 0.0
    %100 = vmatpush2.msra.mxu0 0.0
    %101 = vmatprep.subr.mxu0 0.0
    %102 = vmatpush2.msra.mxu0 0.0
    %103 = vmatprep.subr.mxu0 0.0
    %104 = vmatpush2.msra.mxu0 0.0
    %105 = vmatprep.subr.mxu0 0.0
    %106 = vmatpush2.msra.mxu0 0.0
    %107 = vmatprep.subr.mxu0 0.0
    %108 = vmatpush2.msra.mxu0 0.0
    %109 = vmatprep.mubr.f32.mxu0 0.0
    %110 = vmatmul.mubr.f32.gmra.mxu0 %v25
    %v111 = vpop.f32.mrf.mxu0
    %v112 = vadd.f32 0.0, %v111
    %v113 = vpop.f32.mrf.mxu0
    %114 = vmatprep.mubr.f32.mxu0 0.0
    %115 = vmatmul.mubr.f32.gmra.mxu0 %v26
    %v116 = vpop.f32.mrf.mxu0
    %v117 = vadd.f32 0.0, %v116
    %v118 = vpop.f32.mrf.mxu0
    %119 = vmatprep.mubr.f32.mxu0 0.0
    %120 = vmatmul.mubr.f32.gmra.mxu0 %v27
    %v121 = vpop.f32.mrf.mxu0
    %v122 = vadd.f32 0.0, %v121
    %v123 = vpop.f32.mrf.mxu0
    %124 = vmatprep.mubr.f32.mxu0 0.0
    %125 = vmatmul.mubr.f32.gmra.mxu0 %v28
    %v126 = vpop.f32.mrf.mxu0
    %v127 = vadd.f32 0.0, %v126
    %v128 = vpop.f32.mrf.mxu0
    %129 = vdwg.mxu0
    %130 = vst [vmem:[#allocation2] sm:$0xff] %v112
    %131 = vst [vmem:[#allocation2 + $0x8] sm:$0xff] %v117
    %132 = vst [vmem:[#allocation2 + $0x10] sm:$0xff] %v122
    %133 = vst [vmem:[#allocation2 + $0x18] sm:$0xff] %v127
  $region25: #{rgcn_forward.3} parent=0 // pred_fallthru
    _
  %v134 = vld [vmem:[#allocation2] sm:$0xff]
  %v135 = vld [vmem:[#allocation2 + $0x8] sm:$0xff]
  %v136 = vld [vmem:[#allocation2 + $0x10] sm:$0xff]
  %v137 = vld [vmem:[#allocation2 + $0x18] sm:$0xff]
  %v138 = vld [vmem:[%s1] sm:$0xf]
  %v139 = vld [vmem:[%s1 + $0x4] sm:$0xf]
  %v140 = vld [vmem:[%s1 + $0x8] sm:$0xf]
  %v141 = vld [vmem:[%s1 + $0xc] sm:$0xf]
  %v142 = vld [vmem:[%s2] sm:$0xf]
  %v143 = vld [vmem:[%s2 + $0x4] sm:$0xf]
  %v144 = vld [vmem:[%s2 + $0x8] sm:$0xf]
  %v145 = vld [vmem:[%s2 + $0xc] sm:$0xf]
  %v146 = vld [vmem:[%s2 + $0x10] sm:$0xf]
  %v147 = vld [vmem:[%s2 + $0x14] sm:$0xf]
  %v148 = vld [vmem:[%s2 + $0x18] sm:$0xf]
  %v149 = vld [vmem:[%s2 + $0x1c] sm:$0xf]
  %v150 = vld [vmem:[%s2 + $0x20] sm:$0xf]
  %v151 = vld [vmem:[%s2 + $0x24] sm:$0xf]
  %v152 = vld [vmem:[%s2 + $0x28] sm:$0xf]
  %v153 = vld [vmem:[%s2 + $0x2c] sm:$0xf]
  %v158 = vunpack.c.l.b16 %v138
  %v159 = vunpack.c.l.b16 %v139
  %v160 = vunpack.c.l.b16 %v140
  %v161 = vunpack.c.l.b16 %v141
  %v162 = vpack.c.b16 %v159, %v158
  %v163 = vpack.c.b16 %v161, %v160
  %v176 = vunpack.c.l.b16 %v142
  %v177 = vunpack.c.l.b16 %v143
  %v178 = vunpack.c.l.b16 %v144
  %v179 = vunpack.c.l.b16 %v145
  %v180 = vunpack.c.l.b16 %v146
  %v181 = vunpack.c.l.b16 %v147
  %v182 = vunpack.c.l.b16 %v148
  %v183 = vunpack.c.l.b16 %v149
  %v184 = vunpack.c.l.b16 %v150
  %v185 = vunpack.c.l.b16 %v151
  %v186 = vunpack.c.l.b16 %v152
  %v187 = vunpack.c.l.b16 %v153
  %v188 = vpack.c.b16 %v177, %v176
  %v189 = vpack.c.b16 %v179, %v178
  %v190 = vpack.c.b16 %v181, %v180
  %v191 = vpack.c.b16 %v183, %v182
  %v192 = vpack.c.b16 %v185, %v184
  %v193 = vpack.c.b16 %v187, %v186
  %vm200 = vcmask 785408
  %v202 = vsel %vm200, %v162, 0
  %v205 = vsel %vm200, %v163, 0
  %207 = vmatprep.subr.bf16.mxu0 0
  %208 = vmatpush1.bf16.msra.mxu0 0
  %209 = vmatprep.subr.bf16.mxu0 0
  %210 = vmatpush1.bf16.msra.mxu0 0
  %211 = vmatprep.subr.bf16.mxu0 0
  %212 = vmatpush1.bf16.msra.mxu0 %v193
  %213 = vmatprep.subr.bf16.mxu0 0
  %214 = vmatpush1.bf16.msra.mxu0 %v192
  %215 = vmatprep.subr.bf16.mxu0 0
  %216 = vmatpush1.bf16.msra.mxu0 %v191
  %217 = vmatprep.subr.bf16.mxu0 0
  %218 = vmatpush1.bf16.msra.mxu0 %v190
  %219 = vmatprep.subr.bf16.mxu0 0
  %220 = vmatpush1.bf16.msra.mxu0 %v189
  %221 = vmatprep.subr.bf16.mxu0 0
  %222 = vmatpush1.bf16.msra.mxu0 %v188
  %223 = vmatprep.subr.bf16.mxu0 0
  %224 = vmatpush2.bf16.msra.mxu0 0
  %225 = vmatprep.subr.bf16.mxu0 0
  %226 = vmatpush2.bf16.msra.mxu0 0
  %227 = vmatprep.subr.bf16.mxu0 0
  %228 = vmatpush2.bf16.msra.mxu0 0
  %229 = vmatprep.subr.bf16.mxu0 0
  %230 = vmatpush2.bf16.msra.mxu0 0
  %231 = vmatprep.subr.bf16.mxu0 0
  %232 = vmatpush2.bf16.msra.mxu0 0
  %233 = vmatprep.subr.bf16.mxu0 0
  %234 = vmatpush2.bf16.msra.mxu0 0
  %235 = vmatprep.subr.bf16.mxu0 0
  %236 = vmatpush2.bf16.msra.mxu0 0
  %237 = vmatprep.subr.bf16.mxu0 0
  %238 = vmatpush2.bf16.msra.mxu0 0
  %239 = vmatprep.mubr.bf16.mxu0 0
  %240 = vmatmul.mubr.bf16.gmra.mxu0 %v202
  %v241 = vpop.f32.mrf.mxu0
  %v242 = vadd.f32 0.0, %v241
  %v243 = vpop.f32.mrf.mxu0
  %v244 = vpop.f32.mrf.mxu0
  %v245 = vadd.f32 0.0, %v244
  %v246 = vpop.f32.mrf.mxu0
  %247 = vmatprep.mubr.bf16.mxu0 0
  %248 = vmatmul.mubr.bf16.gmra.mxu0 %v205
  %v249 = vpop.f32.mrf.mxu0
  %v250 = vadd.f32 0.0, %v249
  %v251 = vpop.f32.mrf.mxu0
  %v252 = vpop.f32.mrf.mxu0
  %v253 = vadd.f32 0.0, %v252
  %v254 = vpop.f32.mrf.mxu0
  %255 = vdwg.mxu0
  %v256 = vadd.f32 %v134, %v242
  %v257 = vadd.f32 %v135, %v245
  %v258 = vadd.f32 %v136, %v250
  %v259 = vadd.f32 %v137, %v253
  %260 = vst [vmem:[#allocation2] sm:$0xff] %v256
  %261 = vst [vmem:[#allocation2 + $0x8] sm:$0xff] %v257
  %262 = vst [vmem:[#allocation2 + $0x10] sm:$0xff] %v258
  %263 = vst [vmem:[#allocation2 + $0x18] sm:$0xff] %v259
  // Predicated region
  $region26: #{rgcn_forward.3} parent=0 // pred_check
    %p264 = pneg %p21
  $region27: #{rgcn_forward.3} parent=0 // pred_check_branch
    %266 = sbr.rel (%p264) target = $region29
  $region28: #{rgcn_forward.3} parent=0 // pred_region
    %v267 = vld [vmem:[#allocation2] sm:$0xff]
    %v268 = vld [vmem:[#allocation2 + $0x8] sm:$0xff]
    %v269 = vld [vmem:[#allocation2 + $0x10] sm:$0xff]
    %v270 = vld [vmem:[#allocation2 + $0x18] sm:$0xff]
    %v271 = vld [vmem:[%s4] sm:$0x1]
    %v273 = vlaneseq
    %v274 = vshrl.u32 %v273, 7
    %v275 = vsub.s32 0, %v274
    %v276 = vrot.slane %v271, %v275
    %v278 = vadd.f32 %v267, %v276
    %v279 = vadd.f32 %v268, %v276
    %v280 = vadd.f32 %v269, %v276
    %v281 = vadd.f32 %v270, %v276
    %v282 = vxor.u32 %v278, 2147483648
    %v283 = vxor.u32 %v279, 2147483648
    %v284 = vxor.u32 %v280, 2147483648
    %v285 = vxor.u32 %v281, 2147483648
    %v286 = vmul.f32 %v282, 1.442695
    %v287 = vpow.pop %v286
    %v288 = vmul.f32 %v283, 1.442695
    %v289 = vpow.pop %v288
    %v290 = vmul.f32 %v284, 1.442695
    %v291 = vpow.pop %v290
    %v292 = vmul.f32 %v285, 1.442695
    %v293 = vpow.pop %v292
    %v294 = vadd.f32 %v287, 1.0
    %v295 = vadd.f32 %v289, 1.0
    %v296 = vadd.f32 %v291, 1.0
    %v297 = vadd.f32 %v293, 1.0
    %v298 = vrcp.pop %v294
    %v299 = vmul.f32 1.0, %v298
    %v300 = vrcp.pop %v295
    %v301 = vmul.f32 1.0, %v300
    %v302 = vrcp.pop %v296
    %v303 = vmul.f32 1.0, %v302
    %v304 = vrcp.pop %v297
    %v305 = vmul.f32 1.0, %v304
    %306 = vst [vmem:[%s5] sm:$0xff] %v299
    %307 = vst [vmem:[%s5 + $0x8] sm:$0xff] %v301
    %308 = vst [vmem:[%s5 + $0x10] sm:$0xff] %v303
    %309 = vst [vmem:[%s5 + $0x18] sm:$0xff] %v305
  $region29: #{rgcn_forward.3} parent=0 // pred_fallthru
    _
  // Predicated region
  $region30: #{rgcn_forward.3} parent=0 // pred_check
    _
  $region31: #{rgcn_forward.3} parent=0 // pred_check_branch
    %311 = sbr.rel (0) target = $region33
  $region32: #{rgcn_forward.3} parent=0 // pred_region
    _
  $region33: #{rgcn_forward.3} parent=0 // pred_fallthru
    _
  // Predicated region
  $region34: #{rgcn_forward.3} parent=0 // pred_check
    _
  $region35: #{rgcn_forward.3} parent=0 // pred_check_branch
    %313 = sbr.rel (0) target = $region37
  $region36: #{rgcn_forward.3} parent=0 // pred_region
    _
  $region37: #{rgcn_forward.3} parent=0 // pred_fallthru
    _

// kernel: rgcn_forward.5
$region0: #{rgcn_forward.5}
  #allocation0 [shape = 'u32[]', space=smem, size = 0x4, offset = 0x4, fixed_abs, tag = 'smem constant byte address 0x4 - core index']
  #allocation1 [shape = 'u32[144,128]{1,0:T(1,128)}', space=vmem, size = 0x12000, scoped, tag = 'internal scratch']
  #allocation2 [shape = 'f32[1,1]{1,0:T(1,128)S(1)}', space=vmem, size = 0x200, scoped, tag = 'scoped memory for rgcn_forward.5']
  #allocation3 [shape = 'f32[1,1]{1,0:T(1,128)S(1)}', space=vmem, size = 0x200, scoped, tag = 'scoped memory for rgcn_forward.5']
  %s0 = inlined_call_operand.vmem [shape: f32[32,128], index: 0, kind: input, shape index: {}]
  %s1 = inlined_call_operand.vmem [shape: bf16[32,2], index: 1, kind: input, shape index: {}]
  %s2 = inlined_call_operand.vmem [shape: bf16[2,32], index: 2, kind: input, shape index: {}]
  %s3 = inlined_call_operand.vmem [shape: f32[128,128], index: 3, kind: input, shape index: {}]
  %s4 = inlined_call_operand.vmem [shape: f32[1,128], index: 4, kind: input, shape index: {}]
  %s5 = inlined_call_operand.vmem [shape: f32[1,128], index: 5, kind: input, shape index: {}]
  %s6 = inlined_call_operand.vmem [shape: f32[1,128], index: 6, kind: input, shape index: {}]
  %s7 = inlined_call_operand.vmem [shape: f32[128,1], index: 7, kind: input, shape index: {}]
  %s8 = inlined_call_operand.<no memory space> [shape: f32[1,1], index: 8, kind: input, shape index: {}]
  %s9 = inlined_call_operand.vmem [shape: f32[128,1], index: 9, kind: input, shape index: {}]
  %s10 = inlined_call_operand.<no memory space> [shape: f32[1,1], index: 10, kind: input, shape index: {}]
  %s11 = inlined_call_operand.vmem [shape: f32[2,1], index: 11, kind: output, shape index: {}]
  %s12 = sld [smem:[#allocation0]]
  $region54: #{rgcn_forward.5} parent=0
    _
  %s14 = ssub.s32 1, %s12
  %s15 = scalar_select 0, %s14, %s12
  %v16 = vstv %s8
  %17 = vst [vmem:[#allocation2] sm:$0x1] %v16
  %v18 = vstv %s10
  %19 = vst [vmem:[#allocation3] sm:$0x1] %v18
  // Predicated region
  $region2: #{rgcn_forward.5} parent=0 // pred_check
    _
  $region3: #{rgcn_forward.5} parent=0 // pred_check_branch
    %21 = sbr.rel (0) target = $region5
  $region4: #{rgcn_forward.5} parent=0 // pred_region
    _
  $region5: #{rgcn_forward.5} parent=0 // pred_fallthru
    _
  // Predicated region
  $region6: #{rgcn_forward.5} parent=0 // pred_check
    _
  $region7: #{rgcn_forward.5} parent=0 // pred_check_branch
    %23 = sbr.rel (0) target = $region9
  $region8: #{rgcn_forward.5} parent=0 // pred_region
    _
  $region9: #{rgcn_forward.5} parent=0 // pred_fallthru
    _
  // Predicated region
  $region10: #{rgcn_forward.5} parent=0 // pred_check
    _
  $region11: #{rgcn_forward.5} parent=0 // pred_check_branch
    %25 = sbr.rel (0) target = $region13
  $region12: #{rgcn_forward.5} parent=0 // pred_region
    _
  $region13: #{rgcn_forward.5} parent=0 // pred_fallthru
    _
  // Predicated region
  $region14: #{rgcn_forward.5} parent=0 // pred_check
    _
  $region15: #{rgcn_forward.5} parent=0 // pred_check_branch
    %27 = sbr.rel (0) target = $region17
  $region16: #{rgcn_forward.5} parent=0 // pred_region
    _
  $region17: #{rgcn_forward.5} parent=0 // pred_fallthru
    _
  // Predicated region
  $region18: #{rgcn_forward.5} parent=0 // pred_check
    _
  $region19: #{rgcn_forward.5} parent=0 // pred_check_branch
    %29 = sbr.rel (0) target = $region21
  $region20: #{rgcn_forward.5} parent=0 // pred_region
    _
  $region21: #{rgcn_forward.5} parent=0 // pred_fallthru
    _
  // Predicated region
  $region22: #{rgcn_forward.5} parent=0 // pred_check
    _
  $region23: #{rgcn_forward.5} parent=0 // pred_check_branch
    %31 = sbr.rel (0) target = $region25
  $region24: #{rgcn_forward.5} parent=0 // pred_region
    _
  $region25: #{rgcn_forward.5} parent=0 // pred_fallthru
    _
  // Predicated region
  $region26: #{rgcn_forward.5} parent=0 // pred_check
    _
  $region27: #{rgcn_forward.5} parent=0 // pred_check_branch
    %33 = sbr.rel (0) target = $region29
  $region28: #{rgcn_forward.5} parent=0 // pred_region
    _
  $region29: #{rgcn_forward.5} parent=0 // pred_fallthru
    _
  // Predicated region
  $region30: #{rgcn_forward.5} parent=0 // pred_check
    _
  $region31: #{rgcn_forward.5} parent=0 // pred_check_branch
    %35 = sbr.rel (0) target = $region33
  $region32: #{rgcn_forward.5} parent=0 // pred_region
    _
  $region33: #{rgcn_forward.5} parent=0 // pred_fallthru
    _
  // Predicated region
  $region34: #{rgcn_forward.5} parent=0 // pred_check
    _
  $region35: #{rgcn_forward.5} parent=0 // pred_check_branch
    %37 = sbr.rel (0) target = $region37
  $region36: #{rgcn_forward.5} parent=0 // pred_region
    _
  $region37: #{rgcn_forward.5} parent=0 // pred_fallthru
    _
  // Predicated region
  $region38: #{rgcn_forward.5} parent=0 // pred_check
    _
  $region39: #{rgcn_forward.5} parent=0 // pred_check_branch
    %39 = sbr.rel (0) target = $region41
  $region40: #{rgcn_forward.5} parent=0 // pred_region
    _
  $region41: #{rgcn_forward.5} parent=0 // pred_fallthru
    _
  // Predicated region
  $region42: #{rgcn_forward.5} parent=0 // pred_check
    _
  $region43: #{rgcn_forward.5} parent=0 // pred_check_branch
    %41 = sbr.rel (0) target = $region45
  $region44: #{rgcn_forward.5} parent=0 // pred_region
    _
  $region45: #{rgcn_forward.5} parent=0 // pred_fallthru
    _
  %v42 = vld [vmem:[%s0] sm:$0xff]
  %v43 = vld [vmem:[%s0 + $0x8] sm:$0xff]
  %v44 = vld [vmem:[%s0 + $0x10] sm:$0xff]
  %v45 = vld [vmem:[%s0 + $0x18] sm:$0xff]
  %v46 = vld [vmem:[%s3] sm:$0xff]
  %v47 = vld [vmem:[%s3 + $0x8] sm:$0xff]
  %v48 = vld [vmem:[%s3 + $0x10] sm:$0xff]
  %v49 = vld [vmem:[%s3 + $0x18] sm:$0xff]
  %v50 = vld [vmem:[%s3 + $0x20] sm:$0xff]
  %v51 = vld [vmem:[%s3 + $0x28] sm:$0xff]
  %v52 = vld [vmem:[%s3 + $0x30] sm:$0xff]
  %v53 = vld [vmem:[%s3 + $0x38] sm:$0xff]
  %v54 = vld [vmem:[%s3 + $0x40] sm:$0xff]
  %v55 = vld [vmem:[%s3 + $0x48] sm:$0xff]
  %v56 = vld [vmem:[%s3 + $0x50] sm:$0xff]
  %v57 = vld [vmem:[%s3 + $0x58] sm:$0xff]
  %v58 = vld [vmem:[%s3 + $0x60] sm:$0xff]
  %v59 = vld [vmem:[%s3 + $0x68] sm:$0xff]
  %v60 = vld [vmem:[%s3 + $0x70] sm:$0xff]
  %v61 = vld [vmem:[%s3 + $0x78] sm:$0xff]
  %v62 = vld [vmem:[%s4] sm:$0x1]
  %v64 = vlaneseq
  %v65 = vshrl.u32 %v64, 7
  %v66 = vsub.s32 0, %v65
  %v67 = vrot.slane %v62, %v66
  %69 = vmatprep.subr.mxu0 0.0
  %70 = vmatpush1.msra.mxu0 %v61
  %71 = vmatprep.subr.mxu0 0.0
  %72 = vmatpush1.msra.mxu0 %v60
  %73 = vmatprep.subr.mxu0 0.0
  %74 = vmatpush1.msra.mxu0 %v59
  %75 = vmatprep.subr.mxu0 0.0
  %76 = vmatpush1.msra.mxu0 %v58
  %77 = vmatprep.subr.mxu0 0.0
  %78 = vmatpush1.msra.mxu0 %v57
  %79 = vmatprep.subr.mxu0 0.0
  %80 = vmatpush1.msra.mxu0 %v56
  %81 = vmatprep.subr.mxu0 0.0
  %82 = vmatpush1.msra.mxu0 %v55
  %83 = vmatprep.subr.mxu0 0.0
  %84 = vmatpush1.msra.mxu0 %v54
  %85 = vmatprep.subr.mxu0 0.0
  %86 = vmatpush1.msra.mxu0 %v53
  %87 = vmatprep.subr.mxu0 0.0
  %88 = vmatpush1.msra.mxu0 %v52
  %89 = vmatprep.subr.mxu0 0.0
  %90 = vmatpush1.msra.mxu0 %v51
  %91 = vmatprep.subr.mxu0 0.0
  %92 = vmatpush1.msra.mxu0 %v50
  %93 = vmatprep.subr.mxu0 0.0
  %94 = vmatpush1.msra.mxu0 %v49
  %95 = vmatprep.subr.mxu0 0.0
  %96 = vmatpush1.msra.mxu0 %v48
  %97 = vmatprep.subr.mxu0 0.0
  %98 = vmatpush1.msra.mxu0 %v47
  %99 = vmatprep.subr.mxu0 0.0
  %100 = vmatpush1.msra.mxu0 %v46
  %101 = vmatprep.subr.mxu0 0.0
  %102 = vmatpush2.msra.mxu0 0.0
  %103 = vmatprep.subr.mxu0 0.0
  %104 = vmatpush2.msra.mxu0 0.0
  %105 = vmatprep.subr.mxu0 0.0
  %106 = vmatpush2.msra.mxu0 0.0
  %107 = vmatprep.subr.mxu0 0.0
  %108 = vmatpush2.msra.mxu0 0.0
  %109 = vmatprep.subr.mxu0 0.0
  %110 = vmatpush2.msra.mxu0 0.0
  %111 = vmatprep.subr.mxu0 0.0
  %112 = vmatpush2.msra.mxu0 0.0
  %113 = vmatprep.subr.mxu0 0.0
  %114 = vmatpush2.msra.mxu0 0.0
  %115 = vmatprep.subr.mxu0 0.0
  %116 = vmatpush2.msra.mxu0 0.0
  %117 = vmatprep.subr.mxu0 0.0
  %118 = vmatpush2.msra.mxu0 0.0
  %119 = vmatprep.subr.mxu0 0.0
  %120 = vmatpush2.msra.mxu0 0.0
  %121 = vmatprep.subr.mxu0 0.0
  %122 = vmatpush2.msra.mxu0 0.0
  %123 = vmatprep.subr.mxu0 0.0
  %124 = vmatpush2.msra.mxu0 0.0
  %125 = vmatprep.subr.mxu0 0.0
  %126 = vmatpush2.msra.mxu0 0.0
  %127 = vmatprep.subr.mxu0 0.0
  %128 = vmatpush2.msra.mxu0 0.0
  %129 = vmatprep.subr.mxu0 0.0
  %130 = vmatpush2.msra.mxu0 0.0
  %131 = vmatprep.subr.mxu0 0.0
  %132 = vmatpush2.msra.mxu0 0.0
  %133 = vmatprep.mubr.f32.mxu0 0.0
  %134 = vmatmul.mubr.f32.gmra.mxu0 %v42
  %v135 = vpop.f32.mrf.mxu0
  %v136 = vadd.f32 %v67, %v135
  %v137 = vpop.f32.mrf.mxu0
  %138 = vmatprep.mubr.f32.mxu0 0.0
  %139 = vmatmul.mubr.f32.gmra.mxu0 %v43
  %v140 = vpop.f32.mrf.mxu0
  %v141 = vadd.f32 %v67, %v140
  %v142 = vpop.f32.mrf.mxu0
  %143 = vmatprep.mubr.f32.mxu0 0.0
  %144 = vmatmul.mubr.f32.gmra.mxu0 %v44
  %v145 = vpop.f32.mrf.mxu0
  %v146 = vadd.f32 %v67, %v145
  %v147 = vpop.f32.mrf.mxu0
  %148 = vmatprep.mubr.f32.mxu0 0.0
  %149 = vmatmul.mubr.f32.gmra.mxu0 %v45
  %v150 = vpop.f32.mrf.mxu0
  %v151 = vadd.f32 %v67, %v150
  %v152 = vpop.f32.mrf.mxu0
  %153 = vdwg.mxu0
  %v154 = vadd.f32 %v136, %v141
  %v155 = vadd.f32 %v154, %v146
  %v156 = vadd.f32 %v155, %v151
  %v157 = vrot.slane %v156, 4
  %v158 = vadd.f32 %v156, %v157
  %v159 = vrot.slane %v158, 2
  %v160 = vadd.f32 %v158, %v159
  %v161 = vrot.slane %v160, 1
  %v162 = vadd.f32 %v160, %v161
  %v163 = vrcp.pop 32.0
  %v164 = vmul.f32 %v162, %v163
  %v165 = vsub.f32 %v136, %v164
  %v166 = vsub.f32 %v141, %v164
  %v167 = vsub.f32 %v146, %v164
  %v168 = vsub.f32 %v151, %v164
  %v169 = vmul.f32 %v165, %v165
  %v170 = vmul.f32 %v166, %v166
  %v171 = vmul.f32 %v167, %v167
  %v172 = vmul.f32 %v168, %v168
  %v173 = vadd.f32 %v169, %v170
  %v174 = vadd.f32 %v173, %v171
  %v175 = vadd.f32 %v174, %v172
  %v176 = vrot.slane %v175, 4
  %v177 = vadd.f32 %v175, %v176
  %v178 = vrot.slane %v177, 2
  %v179 = vadd.f32 %v177, %v178
  %v180 = vrot.slane %v179, 1
  %v181 = vadd.f32 %v179, %v180
  %v182 = vmul.f32 %v181, %v163
  %v183 = vadd.f32 %v182, 1e-05
  %v184 = vrsqrt.pop %v183
  %v185 = vmul.f32 %v165, %v184
  %v186 = vmul.f32 %v166, %v184
  %v187 = vmul.f32 %v167, %v184
  %v188 = vmul.f32 %v168, %v184
  %v189 = vld [vmem:[%s5] sm:$0x1]
  %v191 = vlaneseq
  %v192 = vshrl.u32 %v191, 7
  %v193 = vsub.s32 0, %v192
  %v194 = vrot.slane %v189, %v193
  %v196 = vmul.f32 %v185, %v194
  %v197 = vmul.f32 %v186, %v194
  %v198 = vmul.f32 %v187, %v194
  %v199 = vmul.f32 %v188, %v194
  %v200 = vld [vmem:[%s6] sm:$0x1]
  %v202 = vlaneseq
  %v203 = vshrl.u32 %v202, 7
  %v204 = vsub.s32 0, %v203
  %v205 = vrot.slane %v200, %v204
  %v207 = vadd.f32 %v196, %v205
  %v208 = vadd.f32 %v197, %v205
  %v209 = vadd.f32 %v198, %v205
  %v210 = vadd.f32 %v199, %v205
  %v211 = vmax.f32 %v207, 0.0
  %v212 = vmax.f32 %v208, 0.0
  %v213 = vmax.f32 %v209, 0.0
  %v214 = vmax.f32 %v210, 0.0
  %v215 = vld [vmem:[%s7] sm:$0xff]
  %v216 = vld [vmem:[%s7 + $0x8] sm:$0xff]
  %v217 = vld [vmem:[%s7 + $0x10] sm:$0xff]
  %v218 = vld [vmem:[%s7 + $0x18] sm:$0xff]
  %v219 = vld [vmem:[%s7 + $0x20] sm:$0xff]
  %v220 = vld [vmem:[%s7 + $0x28] sm:$0xff]
  %v221 = vld [vmem:[%s7 + $0x30] sm:$0xff]
  %v222 = vld [vmem:[%s7 + $0x38] sm:$0xff]
  %v223 = vld [vmem:[%s7 + $0x40] sm:$0xff]
  %v224 = vld [vmem:[%s7 + $0x48] sm:$0xff]
  %v225 = vld [vmem:[%s7 + $0x50] sm:$0xff]
  %v226 = vld [vmem:[%s7 + $0x58] sm:$0xff]
  %v227 = vld [vmem:[%s7 + $0x60] sm:$0xff]
  %v228 = vld [vmem:[%s7 + $0x68] sm:$0xff]
  %v229 = vld [vmem:[%s7 + $0x70] sm:$0xff]
  %v230 = vld [vmem:[%s7 + $0x78] sm:$0xff]
  %v231 = vld [vmem:[#allocation2] sm:$0x1]
  %v233 = vlaneseq
  %v234 = vshrl.u32 %v233, 7
  %v235 = vsub.s32 0, %v234
  %v236 = vrot.slane %v231, %v235
  %238 = vmatprep.subr.mxu0 0.0
  %239 = vmatpush1.msra.mxu0 %v230
  %240 = vmatprep.subr.mxu0 0.0
  %241 = vmatpush1.msra.mxu0 %v229
  %242 = vmatprep.subr.mxu0 0.0
  %243 = vmatpush1.msra.mxu0 %v228
  %244 = vmatprep.subr.mxu0 0.0
  %245 = vmatpush1.msra.mxu0 %v227
  %246 = vmatprep.subr.mxu0 0.0
  %247 = vmatpush1.msra.mxu0 %v226
  %248 = vmatprep.subr.mxu0 0.0
  %249 = vmatpush1.msra.mxu0 %v225
  %250 = vmatprep.subr.mxu0 0.0
  %251 = vmatpush1.msra.mxu0 %v224
  %252 = vmatprep.subr.mxu0 0.0
  %253 = vmatpush1.msra.mxu0 %v223
  %254 = vmatprep.subr.mxu0 0.0
  %255 = vmatpush1.msra.mxu0 %v222
  %256 = vmatprep.subr.mxu0 0.0
  %257 = vmatpush1.msra.mxu0 %v221
  %258 = vmatprep.subr.mxu0 0.0
  %259 = vmatpush1.msra.mxu0 %v220
  %260 = vmatprep.subr.mxu0 0.0
  %261 = vmatpush1.msra.mxu0 %v219
  %262 = vmatprep.subr.mxu0 0.0
  %263 = vmatpush1.msra.mxu0 %v218
  %264 = vmatprep.subr.mxu0 0.0
  %265 = vmatpush1.msra.mxu0 %v217
  %266 = vmatprep.subr.mxu0 0.0
  %267 = vmatpush1.msra.mxu0 %v216
  %268 = vmatprep.subr.mxu0 0.0
  %269 = vmatpush1.msra.mxu0 %v215
  %270 = vmatprep.subr.mxu0 0.0
  %271 = vmatpush2.msra.mxu0 0.0
  %272 = vmatprep.subr.mxu0 0.0
  %273 = vmatpush2.msra.mxu0 0.0
  %274 = vmatprep.subr.mxu0 0.0
  %275 = vmatpush2.msra.mxu0 0.0
  %276 = vmatprep.subr.mxu0 0.0
  %277 = vmatpush2.msra.mxu0 0.0
  %278 = vmatprep.subr.mxu0 0.0
  %279 = vmatpush2.msra.mxu0 0.0
  %280 = vmatprep.subr.mxu0 0.0
  %281 = vmatpush2.msra.mxu0 0.0
  %282 = vmatprep.subr.mxu0 0.0
  %283 = vmatpush2.msra.mxu0 0.0
  %284 = vmatprep.subr.mxu0 0.0
  %285 = vmatpush2.msra.mxu0 0.0
  %286 = vmatprep.subr.mxu0 0.0
  %287 = vmatpush2.msra.mxu0 0.0
  %288 = vmatprep.subr.mxu0 0.0
  %289 = vmatpush2.msra.mxu0 0.0
  %290 = vmatprep.subr.mxu0 0.0
  %291 = vmatpush2.msra.mxu0 0.0
  %292 = vmatprep.subr.mxu0 0.0
  %293 = vmatpush2.msra.mxu0 0.0
  %294 = vmatprep.subr.mxu0 0.0
  %295 = vmatpush2.msra.mxu0 0.0
  %296 = vmatprep.subr.mxu0 0.0
  %297 = vmatpush2.msra.mxu0 0.0
  %298 = vmatprep.subr.mxu0 0.0
  %299 = vmatpush2.msra.mxu0 0.0
  %300 = vmatprep.subr.mxu0 0.0
  %301 = vmatpush2.msra.mxu0 0.0
  %302 = vmatprep.mubr.f32.mxu0 0.0
  %303 = vmatmul.mubr.f32.gmra.mxu0 %v211
  %v304 = vpop.f32.mrf.mxu0
  %v305 = vadd.f32 %v236, %v304
  %v306 = vpop.f32.mrf.mxu0
  %307 = vmatprep.mubr.f32.mxu0 0.0
  %308 = vmatmul.mubr.f32.gmra.mxu0 %v212
  %v309 = vpop.f32.mrf.mxu0
  %v310 = vadd.f32 %v236, %v309
  %v311 = vpop.f32.mrf.mxu0
  %312 = vmatprep.mubr.f32.mxu0 0.0
  %313 = vmatmul.mubr.f32.gmra.mxu0 %v213
  %v314 = vpop.f32.mrf.mxu0
  %v315 = vadd.f32 %v236, %v314
  %v316 = vpop.f32.mrf.mxu0
  %317 = vmatprep.mubr.f32.mxu0 0.0
  %318 = vmatmul.mubr.f32.gmra.mxu0 %v214
  %v319 = vpop.f32.mrf.mxu0
  %v320 = vadd.f32 %v236, %v319
  %v321 = vpop.f32.mrf.mxu0
  %322 = vdwg.mxu0
  %v323 = vld [vmem:[%s1] sm:$0xf]
  %v324 = vld [vmem:[%s1 + $0x4] sm:$0xf]
  %v325 = vld [vmem:[%s1 + $0x8] sm:$0xf]
  %v326 = vld [vmem:[%s1 + $0xc] sm:$0xf]
  %v327 = vunpack.c.l.bf16 %v323
  %v328 = vunpack.c.l.bf16 %v324
  %v329 = vunpack.c.l.bf16 %v325
  %v330 = vunpack.c.l.bf16 %v326
  %v331 = vld [vmem:[%s2] sm:$0x1]
  %v332 = vunpack.c.l.bf16 %v331
  %vm333 = vcmp.gt.f32.partialorder %v327, 0.0
  %vm334 = vcmp.gt.f32.partialorder %v328, 0.0
  %vm335 = vcmp.gt.f32.partialorder %v329, 0.0
  %vm336 = vcmp.gt.f32.partialorder %v330, 0.0
  %338 = vset.pattern.permute.xlu0 0
  %339 = vperm.xlu0 %338, %v305
  %v340 = vpop.permute.xlu0 %339
  %343 = vset.pattern.permute.xlu0 0
  %344 = vperm.xlu0 %343, %v310
  %v345 = vpop.permute.xlu0 %344
  %348 = vset.pattern.permute.xlu0 0
  %349 = vperm.xlu0 %348, %v315
  %v350 = vpop.permute.xlu0 %349
  %353 = vset.pattern.permute.xlu0 0
  %354 = vperm.xlu0 %353, %v320
  %v355 = vpop.permute.xlu0 %354
  %v357 = vsel %vm333, %v340, -1e+30
  %v358 = vsel %vm334, %v345, -1e+30
  %v359 = vsel %vm335, %v350, -1e+30
  %v360 = vsel %vm336, %v355, -1e+30
  %vm361 = vcmask 15360
  %v362 = vsel %vm361, %v357, -inf
  %v363 = vsel %vm361, %v358, -inf
  %v364 = vsel %vm361, %v359, -inf
  %v365 = vsel %vm361, %v360, -inf
  %v366 = vmax.f32 %v362, %v363
  %v367 = vmax.f32 %v364, %v365
  %v368 = vmax.f32 %v366, %v367
  %v369 = vrot.slane %v368, 4
  %v370 = vmax.f32 %v368, %v369
  %v371 = vrot.slane %v370, 2
  %v372 = vmax.f32 %v370, %v371
  %v373 = vrot.slane %v372, 1
  %v374 = vmax.f32 %v372, %v373
  %v375 = vmul.f32 %v327, %v374
  %v376 = vmul.f32 %v328, %v374
  %v377 = vmul.f32 %v329, %v374
  %v378 = vmul.f32 %v330, %v374
  %v379 = vsel %vm361, %v375, 0.0
  %380 = vadd.xlane.f32.xlu0 %v379
  %v381 = vpop.xlane.xlu0 %380
  %v382 = vsel %vm361, %v376, 0.0
  %383 = vadd.xlane.f32.xlu0 %v382
  %v384 = vpop.xlane.xlu0 %383
  %v385 = vsel %vm361, %v377, 0.0
  %386 = vadd.xlane.f32.xlu0 %v385
  %v387 = vpop.xlane.xlu0 %386
  %v388 = vsel %vm361, %v378, 0.0
  %389 = vadd.xlane.f32.xlu0 %v388
  %v390 = vpop.xlane.xlu0 %389
  %v391 = vsub.f32 %v305, %v381
  %v392 = vsub.f32 %v310, %v384
  %v393 = vsub.f32 %v315, %v387
  %v394 = vsub.f32 %v320, %v390
  %v395 = vmul.f32 %v391, 1.442695
  %v396 = vpow.pop %v395
  %v397 = vmul.f32 %v392, 1.442695
  %v398 = vpow.pop %v397
  %v399 = vmul.f32 %v393, 1.442695
  %v400 = vpow.pop %v399
  %v401 = vmul.f32 %v394, 1.442695
  %v402 = vpow.pop %v401
  %vm403 = vcmask 261120
  %v405 = vsel %vm403, %v332, 0
  %407 = vmatprep.subr.mxu0 0.0
  %408 = vmatpush1.msra.mxu0 0.0
  %409 = vmatprep.subr.mxu0 0.0
  %410 = vmatpush1.msra.mxu0 0.0
  %411 = vmatprep.subr.mxu0 0.0
  %412 = vmatpush1.msra.mxu0 0.0
  %413 = vmatprep.subr.mxu0 0.0
  %414 = vmatpush1.msra.mxu0 0.0
  %415 = vmatprep.subr.mxu0 0.0
  %416 = vmatpush1.msra.mxu0 0.0
  %417 = vmatprep.subr.mxu0 0.0
  %418 = vmatpush1.msra.mxu0 0.0
  %419 = vmatprep.subr.mxu0 0.0
  %420 = vmatpush1.msra.mxu0 0.0
  %421 = vmatprep.subr.mxu0 0.0
  %422 = vmatpush1.msra.mxu0 0.0
  %423 = vmatprep.subr.mxu0 0.0
  %424 = vmatpush1.msra.mxu0 0.0
  %425 = vmatprep.subr.mxu0 0.0
  %426 = vmatpush1.msra.mxu0 0.0
  %427 = vmatprep.subr.mxu0 0.0
  %428 = vmatpush1.msra.mxu0 0.0
  %429 = vmatprep.subr.mxu0 0.0
  %430 = vmatpush1.msra.mxu0 0.0
  %431 = vmatprep.subr.mxu0 0.0
  %432 = vmatpush1.msra.mxu0 %v402
  %433 = vmatprep.subr.mxu0 0.0
  %434 = vmatpush1.msra.mxu0 %v400
  %435 = vmatprep.subr.mxu0 0.0
  %436 = vmatpush1.msra.mxu0 %v398
  %437 = vmatprep.subr.mxu0 0.0
  %438 = vmatpush1.msra.mxu0 %v396
  %439 = vmatprep.subr.mxu0 0.0
  %440 = vmatpush2.msra.mxu0 0.0
  %441 = vmatprep.subr.mxu0 0.0
  %442 = vmatpush2.msra.mxu0 0.0
  %443 = vmatprep.subr.mxu0 0.0
  %444 = vmatpush2.msra.mxu0 0.0
  %445 = vmatprep.subr.mxu0 0.0
  %446 = vmatpush2.msra.mxu0 0.0
  %447 = vmatprep.subr.mxu0 0.0
  %448 = vmatpush2.msra.mxu0 0.0
  %449 = vmatprep.subr.mxu0 0.0
  %450 = vmatpush2.msra.mxu0 0.0
  %451 = vmatprep.subr.mxu0 0.0
  %452 = vmatpush2.msra.mxu0 0.0
  %453 = vmatprep.subr.mxu0 0.0
  %454 = vmatpush2.msra.mxu0 0.0
  %455 = vmatprep.subr.mxu0 0.0
  %456 = vmatpush2.msra.mxu0 0.0
  %457 = vmatprep.subr.mxu0 0.0
  %458 = vmatpush2.msra.mxu0 0.0
  %459 = vmatprep.subr.mxu0 0.0
  %460 = vmatpush2.msra.mxu0 0.0
  %461 = vmatprep.subr.mxu0 0.0
  %462 = vmatpush2.msra.mxu0 0.0
  %463 = vmatprep.subr.mxu0 0.0
  %464 = vmatpush2.msra.mxu0 0.0
  %465 = vmatprep.subr.mxu0 0.0
  %466 = vmatpush2.msra.mxu0 0.0
  %467 = vmatprep.subr.mxu0 0.0
  %468 = vmatpush2.msra.mxu0 0.0
  %469 = vmatprep.subr.mxu0 0.0
  %470 = vmatpush2.msra.mxu0 0.0
  %471 = vmatprep.mubr.f32.mxu0 0.0
  %472 = vmatmul.mubr.f32.gmra.mxu0 %v405
  %v473 = vpop.f32.mrf.mxu0
  %v474 = vadd.f32 0.0, %v473
  %v475 = vpop.f32.mrf.mxu0
  %476 = vdwg.mxu0
  %v477 = vmax.f32 %v474, 1e-12
  %479 = vset.pattern.permute.xlu0 0
  %480 = vperm.xlu0 %479, %v396
  %v481 = vpop.permute.xlu0 %480
  %484 = vset.pattern.permute.xlu0 0
  %485 = vperm.xlu0 %484, %v398
  %v486 = vpop.permute.xlu0 %485
  %489 = vset.pattern.permute.xlu0 0
  %490 = vperm.xlu0 %489, %v400
  %v491 = vpop.permute.xlu0 %490
  %494 = vset.pattern.permute.xlu0 0
  %495 = vperm.xlu0 %494, %v402
  %v496 = vpop.permute.xlu0 %495
  %v498 = vmul.f32 %v481, %v42
  %v499 = vmul.f32 %v486, %v43
  %v500 = vmul.f32 %v491, %v44
  %v501 = vmul.f32 %v496, %v45
  %502 = vmatprep.subr.mxu0 0.0
  %503 = vmatpush1.msra.mxu0 0.0
  %504 = vmatprep.subr.mxu0 0.0
  %505 = vmatpush1.msra.mxu0 0.0
  %506 = vmatprep.subr.mxu0 0.0
  %507 = vmatpush1.msra.mxu0 0.0
  %508 = vmatprep.subr.mxu0 0.0
  %509 = vmatpush1.msra.mxu0 0.0
  %510 = vmatprep.subr.mxu0 0.0
  %511 = vmatpush1.msra.mxu0 0.0
  %512 = vmatprep.subr.mxu0 0.0
  %513 = vmatpush1.msra.mxu0 0.0
  %514 = vmatprep.subr.mxu0 0.0
  %515 = vmatpush1.msra.mxu0 0.0
  %516 = vmatprep.subr.mxu0 0.0
  %517 = vmatpush1.msra.mxu0 0.0
  %518 = vmatprep.subr.mxu0 0.0
  %519 = vmatpush1.msra.mxu0 0.0
  %520 = vmatprep.subr.mxu0 0.0
  %521 = vmatpush1.msra.mxu0 0.0
  %522 = vmatprep.subr.mxu0 0.0
  %523 = vmatpush1.msra.mxu0 0.0
  %524 = vmatprep.subr.mxu0 0.0
  %525 = vmatpush1.msra.mxu0 0.0
  %526 = vmatprep.subr.mxu0 0.0
  %527 = vmatpush1.msra.mxu0 %v501
  %528 = vmatprep.subr.mxu0 0.0
  %529 = vmatpush1.msra.mxu0 %v500
  %530 = vmatprep.subr.mxu0 0.0
  %531 = vmatpush1.msra.mxu0 %v499
  %532 = vmatprep.subr.mxu0 0.0
  %533 = vmatpush1.msra.mxu0 %v498
  %534 = vmatprep.subr.mxu0 0.0
  %535 = vmatpush2.msra.mxu0 0.0
  %536 = vmatprep.subr.mxu0 0.0
  %537 = vmatpush2.msra.mxu0 0.0
  %538 = vmatprep.subr.mxu0 0.0
  %539 = vmatpush2.msra.mxu0 0.0
  %540 = vmatprep.subr.mxu0 0.0
  %541 = vmatpush2.msra.mxu0 0.0
  %542 = vmatprep.subr.mxu0 0.0
  %543 = vmatpush2.msra.mxu0 0.0
  %544 = vmatprep.subr.mxu0 0.0
  %545 = vmatpush2.msra.mxu0 0.0
  %546 = vmatprep.subr.mxu0 0.0
  %547 = vmatpush2.msra.mxu0 0.0
  %548 = vmatprep.subr.mxu0 0.0
  %549 = vmatpush2.msra.mxu0 0.0
  %550 = vmatprep.subr.mxu0 0.0
  %551 = vmatpush2.msra.mxu0 0.0
  %552 = vmatprep.subr.mxu0 0.0
  %553 = vmatpush2.msra.mxu0 0.0
  %554 = vmatprep.subr.mxu0 0.0
  %555 = vmatpush2.msra.mxu0 0.0
  %556 = vmatprep.subr.mxu0 0.0
  %557 = vmatpush2.msra.mxu0 0.0
  %558 = vmatprep.subr.mxu0 0.0
  %559 = vmatpush2.msra.mxu0 0.0
  %560 = vmatprep.subr.mxu0 0.0
  %561 = vmatpush2.msra.mxu0 0.0
  %562 = vmatprep.subr.mxu0 0.0
  %563 = vmatpush2.msra.mxu0 0.0
  %564 = vmatprep.subr.mxu0 0.0
  %565 = vmatpush2.msra.mxu0 0.0
  %566 = vmatprep.mubr.f32.mxu0 0.0
  %567 = vmatmul.mubr.f32.gmra.mxu0 %v405
  %v568 = vpop.f32.mrf.mxu0
  %v569 = vadd.f32 0.0, %v568
  %v570 = vpop.f32.mrf.mxu0
  %571 = vdwg.mxu0
  %573 = vset.pattern.permute.xlu0 0
  %574 = vperm.xlu0 %573, %v477
  %v575 = vpop.permute.xlu0 %574
  %v577 = vrcp.pop %v575
  %v578 = vmul.f32 %v569, %v577
  %v579 = vld [vmem:[%s9] sm:$0xff]
  %v580 = vld [vmem:[%s9 + $0x8] sm:$0xff]
  %v581 = vld [vmem:[%s9 + $0x10] sm:$0xff]
  %v582 = vld [vmem:[%s9 + $0x18] sm:$0xff]
  %v583 = vld [vmem:[%s9 + $0x20] sm:$0xff]
  %v584 = vld [vmem:[%s9 + $0x28] sm:$0xff]
  %v585 = vld [vmem:[%s9 + $0x30] sm:$0xff]
  %v586 = vld [vmem:[%s9 + $0x38] sm:$0xff]
  %v587 = vld [vmem:[%s9 + $0x40] sm:$0xff]
  %v588 = vld [vmem:[%s9 + $0x48] sm:$0xff]
  %v589 = vld [vmem:[%s9 + $0x50] sm:$0xff]
  %v590 = vld [vmem:[%s9 + $0x58] sm:$0xff]
  %v591 = vld [vmem:[%s9 + $0x60] sm:$0xff]
  %v592 = vld [vmem:[%s9 + $0x68] sm:$0xff]
  %v593 = vld [vmem:[%s9 + $0x70] sm:$0xff]
  %v594 = vld [vmem:[%s9 + $0x78] sm:$0xff]
  %v595 = vld [vmem:[#allocation3] sm:$0x1]
  %v597 = vlaneseq
  %v598 = vshrl.u32 %v597, 7
  %v599 = vsub.s32 0, %v598
  %v600 = vrot.slane %v595, %v599
  %602 = vmatprep.subr.mxu0 0.0
  %603 = vmatpush1.msra.mxu0 %v594
  %604 = vmatprep.subr.mxu0 0.0
  %605 = vmatpush1.msra.mxu0 %v593
  %606 = vmatprep.subr.mxu0 0.0
  %607 = vmatpush1.msra.mxu0 %v592
  %608 = vmatprep.subr.mxu0 0.0
  %609 = vmatpush1.msra.mxu0 %v591
  %610 = vmatprep.subr.mxu0 0.0
  %611 = vmatpush1.msra.mxu0 %v590
  %612 = vmatprep.subr.mxu0 0.0
  %613 = vmatpush1.msra.mxu0 %v589
  %614 = vmatprep.subr.mxu0 0.0
  %615 = vmatpush1.msra.mxu0 %v588
  %616 = vmatprep.subr.mxu0 0.0
  %617 = vmatpush1.msra.mxu0 %v587
  %618 = vmatprep.subr.mxu0 0.0
  %619 = vmatpush1.msra.mxu0 %v586
  %620 = vmatprep.subr.mxu0 0.0
  %621 = vmatpush1.msra.mxu0 %v585
  %622 = vmatprep.subr.mxu0 0.0
  %623 = vmatpush1.msra.mxu0 %v584
  %624 = vmatprep.subr.mxu0 0.0
  %625 = vmatpush1.msra.mxu0 %v583
  %626 = vmatprep.subr.mxu0 0.0
  %627 = vmatpush1.msra.mxu0 %v582
  %628 = vmatprep.subr.mxu0 0.0
  %629 = vmatpush1.msra.mxu0 %v581
  %630 = vmatprep.subr.mxu0 0.0
  %631 = vmatpush1.msra.mxu0 %v580
  %632 = vmatprep.subr.mxu0 0.0
  %633 = vmatpush1.msra.mxu0 %v579
  %634 = vmatprep.subr.mxu0 0.0
  %635 = vmatpush2.msra.mxu0 0.0
  %636 = vmatprep.subr.mxu0 0.0
  %637 = vmatpush2.msra.mxu0 0.0
  %638 = vmatprep.subr.mxu0 0.0
  %639 = vmatpush2.msra.mxu0 0.0
  %640 = vmatprep.subr.mxu0 0.0
  %641 = vmatpush2.msra.mxu0 0.0
  %642 = vmatprep.subr.mxu0 0.0
  %643 = vmatpush2.msra.mxu0 0.0
  %644 = vmatprep.subr.mxu0 0.0
  %645 = vmatpush2.msra.mxu0 0.0
  %646 = vmatprep.subr.mxu0 0.0
  %647 = vmatpush2.msra.mxu0 0.0
  %648 = vmatprep.subr.mxu0 0.0
  %649 = vmatpush2.msra.mxu0 0.0
  %650 = vmatprep.subr.mxu0 0.0
  %651 = vmatpush2.msra.mxu0 0.0
  %652 = vmatprep.subr.mxu0 0.0
  %653 = vmatpush2.msra.mxu0 0.0
  %654 = vmatprep.subr.mxu0 0.0
  %655 = vmatpush2.msra.mxu0 0.0
  %656 = vmatprep.subr.mxu0 0.0
  %657 = vmatpush2.msra.mxu0 0.0
  %658 = vmatprep.subr.mxu0 0.0
  %659 = vmatpush2.msra.mxu0 0.0
  %660 = vmatprep.subr.mxu0 0.0
  %661 = vmatpush2.msra.mxu0 0.0
  %662 = vmatprep.subr.mxu0 0.0
  %663 = vmatpush2.msra.mxu0 0.0
  %664 = vmatprep.subr.mxu0 0.0
  %665 = vmatpush2.msra.mxu0 0.0
  %666 = vmatprep.mubr.f32.mxu0 0.0
  %667 = vmatmul.mubr.f32.gmra.mxu0 %v578
  %v668 = vpop.f32.mrf.mxu0
  %v669 = vadd.f32 %v600, %v668
  %v670 = vpop.f32.mrf.mxu0
  %671 = vdwg.mxu0
  %v672 = vxor.u32 %v669, 2147483648
  %v673 = vmul.f32 %v672, 1.442695
  %v674 = vpow.pop %v673
  %v675 = vadd.f32 %v674, 1.0
  %v676 = vrcp.pop %v675
  %v677 = vmul.f32 1.0, %v676
  %vm678 = vcmask 1024
  %679 = vst.msk [vmem:[%s11] sm:$0x3] %vm678, %v677
  // Predicated region
  $region46: #{rgcn_forward.5} parent=0 // pred_check
    _
  $region47: #{rgcn_forward.5} parent=0 // pred_check_branch
    %681 = sbr.rel (0) target = $region49
  $region48: #{rgcn_forward.5} parent=0 // pred_region
    _
  $region49: #{rgcn_forward.5} parent=0 // pred_fallthru
    _
  // Predicated region
  $region50: #{rgcn_forward.5} parent=0 // pred_check
    _
  $region51: #{rgcn_forward.5} parent=0 // pred_check_branch
    %683 = sbr.rel (0) target = $region53
  $region52: #{rgcn_forward.5} parent=0 // pred_region
    _
  $region53: #{rgcn_forward.5} parent=0 // pred_fallthru
    _

</llo_original>
